<compile_context>
chip_gen: v7x
topology: tpu7x:2x2x1
jax: 0.10.0
libtpu: 0.0.40
codegen_flags: <defaults>
</compile_context>

<pallas_src>
import jax
import jax.numpy as jnp
from jax.experimental import pallas as pl
from jax.experimental.pallas import tpu as pltpu


def _round_up(a: int, m: int) -> int:
    return ((a + m - 1) // m) * m


def mlp_kernel(x_ref, w1_ref, b1_ref, w2_ref, b2_ref, w3_ref, b3_ref,
               scale_ref, shift_ref, o_ref):
    # Layer 1: Linear (bf16 in, f32 acc) + bias + ReLU (f32, VPU)
    h = jnp.dot(x_ref[...], w1_ref[...], preferred_element_type=jnp.float32)
    h = jnp.maximum(h + b1_ref[...], 0.0).astype(jnp.bfloat16)

    # Layer 2: Linear + bias + ReLU
    h = jnp.dot(h, w2_ref[...], preferred_element_type=jnp.float32)
    h = jnp.maximum(h + b2_ref[...], 0.0).astype(jnp.bfloat16)

    # Classifier, lane-dense: (NC, D2) x (bm, D2) contracting last dims -> (NC, bm)
    o = jax.lax.dot_general(
        w3_ref[...], h, (((1,), (1,)), ((), ())),
        preferred_element_type=jnp.float32)
    # bias + BatchNorm1d (eval mode, folded to per-class scale/shift)
    o = (o + b3_ref[...]) * scale_ref[...] + shift_ref[...]

    o_ref[...] = o[None].astype(o_ref.dtype)  # (1, NC, bm)


def feature_encoder_forward(x, params, *, bm=512, eps=1e-5):
    """x: [B, D0] float32.

    params:
      w1 (D0,D1), b1 (1,D1), w2 (D1,D2), b2 (1,D2)       -- hidden Linear layers
      w3 (NC,D2) [PyTorch (out,in) layout], b3 (NC,1)     -- classifier
      bn_gamma/bn_beta/bn_mean/bn_var (NC,)               -- BatchNorm1d buffers
    """
    B, D0 = x.shape
    w1, b1 = params["w1"], params["b1"]
    w2, b2 = params["w2"], params["b2"]
    w3, b3 = params["w3"], params["b3"]
    D1 = w1.shape[1]
    D2 = w2.shape[1]
    NC = w3.shape[0]
    assert NC == 1, "lane-dense output path assumes n_classes == 1"
    # TODO(synk): n_classes > 1 would need a (bm, NC) output layout and an
    # interleaved flatten to match x.view(-1) ordering.

    # Fold BatchNorm1d (inference mode: running stats) into scale/shift.
    # TODO(synk): train-mode BN (batch statistics) is not modeled.
    scale = params["bn_gamma"] / jnp.sqrt(params["bn_var"] + eps)
    shift = params["bn_beta"] - params["bn_mean"] * scale
    scale = scale.reshape(NC, 1).astype(jnp.float32)
    shift = shift.reshape(NC, 1).astype(jnp.float32)

    # Bounded batch tile (multiple of 8); pad B so no remainder rows are dropped.
    bm = max(8, min(int(bm), _round_up(B, 8)))
    bm = _round_up(bm, 8)
    Bp = _round_up(B, bm)
    num_tiles = Bp // bm

    # bf16 inputs for the MXU; biases / BN stay f32.
    xb = x.astype(jnp.bfloat16)
    if Bp != B:
        xb = jnp.pad(xb, ((0, Bp - B), (0, 0)))
    w1b = w1.astype(jnp.bfloat16)
    w2b = w2.astype(jnp.bfloat16)
    w3b = w3.astype(jnp.bfloat16)
    b1f = b1.astype(jnp.float32)
    b2f = b2.astype(jnp.float32)
    b3f = b3.astype(jnp.float32)

    out = pl.pallas_call(
        mlp_kernel,
        out_shape=jax.ShapeDtypeStruct((num_tiles, NC, bm), jnp.float32),
        grid_spec=pltpu.PrefetchScalarGridSpec(
            num_scalar_prefetch=0,
            grid=(num_tiles,),
            in_specs=[
                pl.BlockSpec((bm, D0), lambda i: (i, 0)),   # x tile
                pl.BlockSpec((D0, D1), lambda i: (0, 0)),   # W1 (resident)
                pl.BlockSpec((1, D1), lambda i: (0, 0)),    # b1
                pl.BlockSpec((D1, D2), lambda i: (0, 0)),   # W2
                pl.BlockSpec((1, D2), lambda i: (0, 0)),    # b2
                pl.BlockSpec((NC, D2), lambda i: (0, 0)),   # W3 (out,in layout)
                pl.BlockSpec((NC, 1), lambda i: (0, 0)),    # b3
                pl.BlockSpec((NC, 1), lambda i: (0, 0)),    # bn scale
                pl.BlockSpec((NC, 1), lambda i: (0, 0)),    # bn shift
            ],
            out_specs=pl.BlockSpec((1, NC, bm), lambda i: (i, 0, 0)),
        ),
        compiler_params=pltpu.CompilerParams(
            dimension_semantics=("parallel",),
            vmem_limit_bytes=48 * 1024 * 1024,   # safe on v5e/v6e (128 MiB) and v7x (64 MiB)
        ),
    )(xb, w1b, b1f, w2b, b2f, w3b, b3f, scale, shift)

    # x.view(-1) in the PyTorch module; drop padded rows.
    return out.reshape(-1)[: B * NC]


def init_params(key, num_layers, n_classes=1):
    """Deterministic init mirroring PyTorch defaults (weights kept (in,out) for
    hidden layers, (out,in) for the classifier). BN buffers simulate trained stats."""
    dims = list(num_layers)
    params = {}
    for idx in range(len(dims) - 1):
        fan_in, fan_out = dims[idx], dims[idx + 1]
        key, kw, kb = jax.random.split(key, 3)
        bound = 1.0 / (fan_in ** 0.5)
        params[f"w{idx + 1}"] = jax.random.uniform(
            kw, (fan_in, fan_out), jnp.float32, -bound, bound)
        params[f"b{idx + 1}"] = jax.random.uniform(
            kb, (1, fan_out), jnp.float32, -bound, bound)
    # classifier (kept in PyTorch (out, in) layout for the lane-dense kernel)
    fan_in = dims[-1]
    key, kw, kb = jax.random.split(key, 3)
    bound = 1.0 / (fan_in ** 0.5)
    params["w3"] = jax.random.uniform(kw, (n_classes, fan_in), jnp.float32, -bound, bound)
    params["b3"] = jax.random.uniform(kb, (n_classes, 1), jnp.float32, -bound, bound)
    # BatchNorm1d(n_classes) inference-mode buffers / affine params
    key, kg, kbt, km, kv = jax.random.split(key, 5)
    params["bn_gamma"] = jax.random.uniform(kg, (n_classes,), jnp.float32, 0.5, 1.5)
    params["bn_beta"] = jax.random.uniform(kbt, (n_classes,), jnp.float32, -0.5, 0.5)
    params["bn_mean"] = 0.1 * jax.random.normal(km, (n_classes,), jnp.float32)
    params["bn_var"] = jax.random.uniform(kv, (n_classes,), jnp.float32, 0.5, 1.5)
    return params
    # TODO(synk): bn=True in _make_layer (per-hidden-layer BatchNorm1d) is not modeled
    # (module default is bn=False).


def reference_forward(x, params, eps=1e-5):
    """Pure-JAX reference with the same bf16-input / f32-accumulate numerics."""
    w1 = params["w1"].astype(jnp.bfloat16)
    w2 = params["w2"].astype(jnp.bfloat16)
    w3 = params["w3"].astype(jnp.bfloat16)
    h = jnp.dot(x.astype(jnp.bfloat16), w1, preferred_element_type=jnp.float32)
    h = jnp.maximum(h + params["b1"], 0.0).astype(jnp.bfloat16)
    h = jnp.dot(h, w2, preferred_element_type=jnp.float32)
    h = jnp.maximum(h + params["b2"], 0.0).astype(jnp.bfloat16)
    o = jax.lax.dot_general(h, w3, (((1,), (1,)), ((), ())),
                            preferred_element_type=jnp.float32)     # (B, NC)
    o = o + params["b3"].T
    scale = params["bn_gamma"] / jnp.sqrt(params["bn_var"] + eps)
    shift = params["bn_beta"] - params["bn_mean"] * scale
    o = o * scale + shift
    return o.reshape(-1)


if __name__ == "__main__":
    # feature_encoder_bn(num_layers=[32, 64, 32], n_classes=1, bn=False)
    num_layers = [32, 64, 32]
    n_classes = 1

    key = jax.random.PRNGKey(0)
    key, kx1, kx2 = jax.random.split(key, 3)
    params = init_params(key, num_layers, n_classes)

    # 1) Tiny demo batch (single grid step).
    B = 8
    x = jax.random.normal(kx1, (B, num_layers[0]), jnp.float32)
    y = jax.block_until_ready(feature_encoder_forward(x, params))
    y_ref = reference_forward(x, params)
    assert y.shape == (B * n_classes,)
    assert jnp.allclose(y, y_ref, atol=1e-2, rtol=1e-2)

    # 2) Multi-tile path: exercises batch padding (300 -> 384) and a 3-step grid.
    B2 = 300
    x2 = jax.random.normal(kx2, (B2, num_layers[0]), jnp.float32)
    y2 = jax.block_until_ready(feature_encoder_forward(x2, params, bm=128))
    y2_ref = reference_forward(x2, params)
    assert y2.shape == (B2 * n_classes,)
    assert jnp.allclose(y2, y2_ref, atol=1e-2, rtol=1e-2)

    print("KERNEL_OK")
</pallas_src>

<mosaic_0001>
module attributes {stable_mosaic.version = 11 : i64} {
  func.func @mlp_kernel(%arg0: i32, %arg1: memref<8x32xbf16, #tpu.memory_space<vmem>>, %arg2: memref<32x64xbf16, #tpu.memory_space<vmem>>, %arg3: memref<1x64xf32, #tpu.memory_space<vmem>>, %arg4: memref<64x32xbf16, #tpu.memory_space<vmem>>, %arg5: memref<1x32xf32, #tpu.memory_space<vmem>>, %arg6: memref<1x32xbf16, #tpu.memory_space<vmem>>, %arg7: memref<1x1xf32, #tpu.memory_space<vmem>>, %arg8: memref<1x1xf32, #tpu.memory_space<vmem>>, %arg9: memref<1x1xf32, #tpu.memory_space<vmem>>, %arg10: memref<1x1x8xf32, #tpu.memory_space<vmem>>) attributes {dimension_semantics = [#tpu.dimension_semantics<parallel>], iteration_bounds = array<i64: 1>, scalar_prefetch = 0 : i64, scratch_operands = 0 : i64, tpu.core_type = #tpu.core_type<tc>, window_params = [{transform_indices = @transform_0, window_bounds = array<i64: 8, 32>}, {pipeline_mode = #tpu.pipeline_mode<synchronous>, transform_indices = @transform_1, window_bounds = array<i64: 32, 64>}, {pipeline_mode = #tpu.pipeline_mode<synchronous>, transform_indices = @transform_2, window_bounds = array<i64: 1, 64>}, {pipeline_mode = #tpu.pipeline_mode<synchronous>, transform_indices = @transform_3, window_bounds = array<i64: 64, 32>}, {pipeline_mode = #tpu.pipeline_mode<synchronous>, transform_indices = @transform_4, window_bounds = array<i64: 1, 32>}, {pipeline_mode = #tpu.pipeline_mode<synchronous>, transform_indices = @transform_5, window_bounds = array<i64: 1, 32>}, {pipeline_mode = #tpu.pipeline_mode<synchronous>, transform_indices = @transform_6, window_bounds = array<i64: 1, 1>}, {pipeline_mode = #tpu.pipeline_mode<synchronous>, transform_indices = @transform_7, window_bounds = array<i64: 1, 1>}, {pipeline_mode = #tpu.pipeline_mode<synchronous>, transform_indices = @transform_8, window_bounds = array<i64: 1, 1>}, {transform_indices = @transform_9, window_bounds = array<i64: 1, 1, 8>}]} {
    %c0 = arith.constant 0 : index
    %c0_0 = arith.constant 0 : index
    %0 = vector.load %arg1[%c0, %c0_0] : memref<8x32xbf16, #tpu.memory_space<vmem>>, vector<8x32xbf16>
    %c0_1 = arith.constant 0 : index
    %c0_2 = arith.constant 0 : index
    %1 = vector.load %arg2[%c0_1, %c0_2] : memref<32x64xbf16, #tpu.memory_space<vmem>>, vector<32x64xbf16>
    %cst = arith.constant dense<0.000000e+00> : vector<8x64xf32>
    %2 = tpu.matmul %0, %1, %cst {dimension_numbers = #tpu.dot_dimension_numbers<[1], [0], [0], [1], [0, 0, 1, 1], [], []>} : vector<8x32xbf16>, vector<32x64xbf16>, vector<8x64xf32> -> vector<8x64xf32>
    %c0_3 = arith.constant 0 : index
    %c0_4 = arith.constant 0 : index
    %3 = vector.load %arg3[%c0_3, %c0_4] : memref<1x64xf32, #tpu.memory_space<vmem>>, vector<1x64xf32>
    %4 = vector.broadcast %3 : vector<1x64xf32> to vector<8x64xf32>
    %5 = arith.addf %2, %4 : vector<8x64xf32>
    %cst_5 = arith.constant 0.000000e+00 : f32
    %6 = vector.broadcast %cst_5 : f32 to vector<8x64xf32>
    %7 = arith.maximumf %5, %6 : vector<8x64xf32>
    %8 = arith.truncf %7 : vector<8x64xf32> to vector<8x64xbf16>
    %c0_6 = arith.constant 0 : index
    %c0_7 = arith.constant 0 : index
    %9 = vector.load %arg4[%c0_6, %c0_7] : memref<64x32xbf16, #tpu.memory_space<vmem>>, vector<64x32xbf16>
    %cst_8 = arith.constant dense<0.000000e+00> : vector<8x32xf32>
    %10 = tpu.matmul %8, %9, %cst_8 {dimension_numbers = #tpu.dot_dimension_numbers<[1], [0], [0], [1], [0, 0, 1, 1], [], []>} : vector<8x64xbf16>, vector<64x32xbf16>, vector<8x32xf32> -> vector<8x32xf32>
    %c0_9 = arith.constant 0 : index
    %c0_10 = arith.constant 0 : index
    %11 = vector.load %arg5[%c0_9, %c0_10] : memref<1x32xf32, #tpu.memory_space<vmem>>, vector<1x32xf32>
    %12 = vector.broadcast %11 : vector<1x32xf32> to vector<8x32xf32>
    %13 = arith.addf %10, %12 : vector<8x32xf32>
    %cst_11 = arith.constant 0.000000e+00 : f32
    %14 = vector.broadcast %cst_11 : f32 to vector<8x32xf32>
    %15 = arith.maximumf %13, %14 : vector<8x32xf32>
    %16 = arith.truncf %15 : vector<8x32xf32> to vector<8x32xbf16>
    %c0_12 = arith.constant 0 : index
    %c0_13 = arith.constant 0 : index
    %17 = vector.load %arg6[%c0_12, %c0_13] : memref<1x32xbf16, #tpu.memory_space<vmem>>, vector<1x32xbf16>
    %cst_14 = arith.constant dense<0.000000e+00> : vector<1x8xf32>
    %18 = tpu.matmul %17, %16, %cst_14 {dimension_numbers = #tpu.dot_dimension_numbers<[1], [1], [0], [0], [0, 0, 1, 0], [], []>} : vector<1x32xbf16>, vector<8x32xbf16>, vector<1x8xf32> -> vector<1x8xf32>
    %c0_15 = arith.constant 0 : index
    %c0_16 = arith.constant 0 : index
    %19 = vector.load %arg7[%c0_15, %c0_16] : memref<1x1xf32, #tpu.memory_space<vmem>>, vector<1x1xf32>
    %20 = vector.broadcast %19 : vector<1x1xf32> to vector<1x8xf32>
    %21 = arith.addf %18, %20 : vector<1x8xf32>
    %c0_17 = arith.constant 0 : index
    %c0_18 = arith.constant 0 : index
    %22 = vector.load %arg8[%c0_17, %c0_18] : memref<1x1xf32, #tpu.memory_space<vmem>>, vector<1x1xf32>
    %23 = vector.broadcast %22 : vector<1x1xf32> to vector<1x8xf32>
    %24 = arith.mulf %21, %23 : vector<1x8xf32>
    %c0_19 = arith.constant 0 : index
    %c0_20 = arith.constant 0 : index
    %25 = vector.load %arg9[%c0_19, %c0_20] : memref<1x1xf32, #tpu.memory_space<vmem>>, vector<1x1xf32>
    %26 = vector.broadcast %25 : vector<1x1xf32> to vector<1x8xf32>
    %27 = arith.addf %24, %26 : vector<1x8xf32>
    %28 = vector.shape_cast %27 : vector<1x8xf32> to vector<1x1x8xf32>
    %c0_21 = arith.constant 0 : index
    %c0_22 = arith.constant 0 : index
    %c0_23 = arith.constant 0 : index
    %29 = vector.load %arg10[%c0_21, %c0_22, %c0_23] : memref<1x1x8xf32, #tpu.memory_space<vmem>>, vector<1x1x8xf32>
    tpu.vector_store %arg10[%c0_21, %c0_22, %c0_23], %28 {strides = array<i32>} : memref<1x1x8xf32, #tpu.memory_space<vmem>>, vector<1x1x8xf32>,
    return
  }
  func.func @transform_0(%arg0: i32) -> (i32, i32) {
    %c0_i32 = arith.constant 0 : i32
    %c0_i32_0 = arith.constant 0 : i32
    return %arg0, %c0_i32 : i32, i32
  }
  func.func @transform_1(%arg0: i32) -> (i32, i32) {
    %c0_i32 = arith.constant 0 : i32
    %c0_i32_0 = arith.constant 0 : i32
    %c0_i32_1 = arith.constant 0 : i32
    return %c0_i32, %c0_i32_0 : i32, i32
  }
  func.func @transform_2(%arg0: i32) -> (i32, i32) {
    %c0_i32 = arith.constant 0 : i32
    %c0_i32_0 = arith.constant 0 : i32
    %c0_i32_1 = arith.constant 0 : i32
    return %c0_i32, %c0_i32_0 : i32, i32
  }
  func.func @transform_3(%arg0: i32) -> (i32, i32) {
    %c0_i32 = arith.constant 0 : i32
    %c0_i32_0 = arith.constant 0 : i32
    %c0_i32_1 = arith.constant 0 : i32
    return %c0_i32, %c0_i32_0 : i32, i32
  }
  func.func @transform_4(%arg0: i32) -> (i32, i32) {
    %c0_i32 = arith.constant 0 : i32
    %c0_i32_0 = arith.constant 0 : i32
    %c0_i32_1 = arith.constant 0 : i32
    return %c0_i32, %c0_i32_0 : i32, i32
  }
  func.func @transform_5(%arg0: i32) -> (i32, i32) {
    %c0_i32 = arith.constant 0 : i32
    %c0_i32_0 = arith.constant 0 : i32
    %c0_i32_1 = arith.constant 0 : i32
    return %c0_i32, %c0_i32_0 : i32, i32
  }
  func.func @transform_6(%arg0: i32) -> (i32, i32) {
    %c0_i32 = arith.constant 0 : i32
    %c0_i32_0 = arith.constant 0 : i32
    %c0_i32_1 = arith.constant 0 : i32
    return %c0_i32, %c0_i32_0 : i32, i32
  }
  func.func @transform_7(%arg0: i32) -> (i32, i32) {
    %c0_i32 = arith.constant 0 : i32
    %c0_i32_0 = arith.constant 0 : i32
    %c0_i32_1 = arith.constant 0 : i32
    return %c0_i32, %c0_i32_0 : i32, i32
  }
  func.func @transform_8(%arg0: i32) -> (i32, i32) {
    %c0_i32 = arith.constant 0 : i32
    %c0_i32_0 = arith.constant 0 : i32
    %c0_i32_1 = arith.constant 0 : i32
    return %c0_i32, %c0_i32_0 : i32, i32
  }
  func.func @transform_9(%arg0: i32) -> (i32, i32, i32) {
    %c0_i32 = arith.constant 0 : i32
    %c0_i32_0 = arith.constant 0 : i32
    %c0_i32_1 = arith.constant 0 : i32
    return %arg0, %c0_i32, %c0_i32_0 : i32, i32, i32
  }
}

</mosaic_0001>

<llo_original>
// kernel: tpu_custom_call.1
$region0: #{tpu_custom_call.1}
  #allocation0 [shape = 'u32[]', space=smem, size = 0x4, offset = 0x4, fixed_abs, tag = 'smem constant byte address 0x4 - core index']
  #allocation1 [shape = 'u32[144,128]{1,0:T(1,128)}', space=vmem, size = 0x12000, scoped, tag = 'internal scratch']
  #allocation2 [shape = 'f32[1,1]{1,0:T(1,128)S(1)}', space=vmem, size = 0x200, scoped, tag = 'scoped memory for tpu_custom_call.1']
  #allocation3 [shape = 'f32[1,1]{1,0:T(1,128)S(1)}', space=vmem, size = 0x200, scoped, tag = 'scoped memory for tpu_custom_call.1']
  #allocation4 [shape = 'f32[1,1]{1,0:T(1,128)S(1)}', space=vmem, size = 0x200, scoped, tag = 'scoped memory for tpu_custom_call.1']
  %s0 = inlined_call_operand.vmem [shape: bf16[8,32], index: 0, kind: input, shape index: {}]
  %s1 = inlined_call_operand.vmem [shape: bf16[32,64], index: 1, kind: input, shape index: {}]
  %s2 = inlined_call_operand.vmem [shape: f32[1,64], index: 2, kind: input, shape index: {}]
  %s3 = inlined_call_operand.vmem [shape: bf16[64,32], index: 3, kind: input, shape index: {}]
  %s4 = inlined_call_operand.vmem [shape: f32[1,32], index: 4, kind: input, shape index: {}]
  %s5 = inlined_call_operand.vmem [shape: bf16[1,32], index: 5, kind: input, shape index: {}]
  %s6 = inlined_call_operand.<no memory space> [shape: f32[1,1], index: 6, kind: input, shape index: {}]
  %s7 = inlined_call_operand.<no memory space> [shape: f32[1,1], index: 7, kind: input, shape index: {}]
  %s8 = inlined_call_operand.<no memory space> [shape: f32[1,1], index: 8, kind: input, shape index: {}]
  %s9 = inlined_call_operand.hbm [shape: f32[1,1,8], index: 9, kind: output, shape index: {}]
  %s10 = sld [smem:[#allocation0]]
  $region46: #{tpu_custom_call.1} parent=0
    _
  %s12 = ssub.s32 1, %s10
  %s13 = scalar_select 0, %s12, %s10
  %v14 = vstv %s6
  %15 = vst [vmem:[#allocation2] sm:$0x1] %v14
  %v16 = vstv %s7
  %17 = vst [vmem:[#allocation3] sm:$0x1] %v16
  %v18 = vstv %s8
  %19 = vst [vmem:[#allocation4] sm:$0x1] %v18
  $region1: #{tpu_custom_call.1} parent=0
    #allocation5 [shape = 'u8[512]{0}', space=vmem, size = 0x400, scoped, tag = 'output window, operand 0, single buffered']
    #allocation6 [shape = 's32[1]{0}', space=sflag, size = 0x4, scoped, tag = 'scoped memory for tpu_custom_call.1']
    %20 = vsyncpa [#allocation6], 0
    // Predicated region
    $region2: #{tpu_custom_call.1} parent=1 // pred_check
      _
    $region3: #{tpu_custom_call.1} parent=1 // pred_check_branch
      %22 = sbr.rel (0) target = $region5
    $region4: #{tpu_custom_call.1} parent=1 // pred_region
      _
    $region5: #{tpu_custom_call.1} parent=1 // pred_fallthru
      _
    // Predicated region
    $region6: #{tpu_custom_call.1} parent=1 // pred_check
      _
    $region7: #{tpu_custom_call.1} parent=1 // pred_check_branch
      %24 = sbr.rel (0) target = $region9
    $region8: #{tpu_custom_call.1} parent=1 // pred_region
      _
    $region9: #{tpu_custom_call.1} parent=1 // pred_fallthru
      _
    // Predicated region
    $region10: #{tpu_custom_call.1} parent=1 // pred_check
      _
    $region11: #{tpu_custom_call.1} parent=1 // pred_check_branch
      %26 = sbr.rel (0) target = $region13
    $region12: #{tpu_custom_call.1} parent=1 // pred_region
      _
    $region13: #{tpu_custom_call.1} parent=1 // pred_fallthru
      _
    // Predicated region
    $region14: #{tpu_custom_call.1} parent=1 // pred_check
      _
    $region15: #{tpu_custom_call.1} parent=1 // pred_check_branch
      %28 = sbr.rel (0) target = $region17
    $region16: #{tpu_custom_call.1} parent=1 // pred_region
      _
    $region17: #{tpu_custom_call.1} parent=1 // pred_fallthru
      _
    // Predicated region
    $region18: #{tpu_custom_call.1} parent=1 // pred_check
      _
    $region19: #{tpu_custom_call.1} parent=1 // pred_check_branch
      %30 = sbr.rel (0) target = $region21
    $region20: #{tpu_custom_call.1} parent=1 // pred_region
      _
    $region21: #{tpu_custom_call.1} parent=1 // pred_fallthru
      _
    // Predicated region
    $region22: #{tpu_custom_call.1} parent=1 // pred_check
      _
    $region23: #{tpu_custom_call.1} parent=1 // pred_check_branch
      %32 = sbr.rel (0) target = $region25
    $region24: #{tpu_custom_call.1} parent=1 // pred_region
      _
    $region25: #{tpu_custom_call.1} parent=1 // pred_fallthru
      _
    // Predicated region
    $region26: #{tpu_custom_call.1} parent=1 // pred_check
      _
    $region27: #{tpu_custom_call.1} parent=1 // pred_check_branch
      %34 = sbr.rel (0) target = $region29
    $region28: #{tpu_custom_call.1} parent=1 // pred_region
      _
    $region29: #{tpu_custom_call.1} parent=1 // pred_fallthru
      _
    // Predicated region
    $region30: #{tpu_custom_call.1} parent=1 // pred_check
      _
    $region31: #{tpu_custom_call.1} parent=1 // pred_check_branch
      %36 = sbr.rel (0) target = $region33
    $region32: #{tpu_custom_call.1} parent=1 // pred_region
      _
    $region33: #{tpu_custom_call.1} parent=1 // pred_fallthru
      _
    // Predicated region
    $region34: #{tpu_custom_call.1} parent=1 // pred_check
      _
    $region35: #{tpu_custom_call.1} parent=1 // pred_check_branch
      %38 = sbr.rel (0) target = $region37
    $region36: #{tpu_custom_call.1} parent=1 // pred_region
      _
    $region37: #{tpu_custom_call.1} parent=1 // pred_fallthru
      _
    %v40 = vld [vmem:[%s0] sm:$0xf]
    %v41 = vld [vmem:[%s1] sm:$0xf]
    %v42 = vld [vmem:[%s1 + $0x4] sm:$0xf]
    %v43 = vld [vmem:[%s1 + $0x8] sm:$0xf]
    %v44 = vld [vmem:[%s1 + $0xc] sm:$0xf]
    %v45 = vld [vmem:[%s2] sm:$0x1]
    %v47 = vlaneseq
    %v48 = vshrl.u32 %v47, 7
    %v49 = vsub.s32 0, %v48
    %v50 = vrot.slane %v45, %v49
    %v56 = vunpack.c.l.b16 %v41
    %v57 = vunpack.c.l.b16 %v42
    %v58 = vunpack.c.l.b16 %v43
    %v59 = vunpack.c.l.b16 %v44
    %v60 = vpack.c.b16 %v57, %v56
    %v61 = vpack.c.b16 %v59, %v58
    %vm64 = vcmask 261120
    %v66 = vsel %vm64, %v40, 0
    %68 = vmatprep.subr.bf16.mxu0 0
    %69 = vmatpush1.bf16.msra.mxu0 %v60
    %70 = vmatprep.subr.bf16.mxu0 0
    %71 = vmatpush1.bf16.msra.mxu0 %v61
    %72 = vmatprep.subr.bf16.mxu0 0
    %73 = vmatpush1.bf16.msra.mxu0 0
    %74 = vmatprep.subr.bf16.mxu0 0
    %75 = vmatpush1.bf16.msra.mxu0 0
    %76 = vmatprep.subr.bf16.mxu0 0
    %77 = vmatpush1.bf16.msra.mxu0 0
    %78 = vmatprep.subr.bf16.mxu0 0
    %79 = vmatpush1.bf16.msra.mxu0 0
    %80 = vmatprep.subr.bf16.mxu0 0
    %81 = vmatpush1.bf16.msra.mxu0 0
    %82 = vmatprep.subr.bf16.mxu0 0
    %83 = vmatpush1.bf16.msra.mxu0 0
    %84 = vmatprep.subr.bf16.mxu0 0
    %85 = vmatpush1.bf16.msra.mxu0 0
    %86 = vmatprep.subr.bf16.mxu0 0
    %87 = vmatpush1.bf16.msra.mxu0 0
    %88 = vmatprep.subr.bf16.mxu0 0
    %89 = vmatpush1.bf16.msra.mxu0 0
    %90 = vmatprep.subr.bf16.mxu0 0
    %91 = vmatpush1.bf16.msra.mxu0 0
    %92 = vmatprep.subr.bf16.mxu0 0
    %93 = vmatpush1.bf16.msra.mxu0 0
    %94 = vmatprep.subr.bf16.mxu0 0
    %95 = vmatpush1.bf16.msra.mxu0 0
    %96 = vmatprep.subr.bf16.mxu0 0
    %97 = vmatpush1.bf16.msra.mxu0 0
    %98 = vmatprep.subr.bf16.mxu0 0
    %99 = vmatpush1.bf16.msra.mxu0 0
    %100 = vmatprep.mubr.bf16.mxu0 0
    %101 = vmatmul.mubr.bf16.gmra.mrb[0].mxu0 %v66
    %v102 = vpop.f32.mrb[0].mxu0
    %v103 = vadd.f32 %v50, %v102
    %v104 = vpop.f32.mrb[0].mxu0
    %v105 = vpop.f32.mrb[0].mxu0
    %v106 = vpop.f32.mrb[0].mxu0
    %107 = vdwg.mxu0
    %v108 = vmax.f32 %v103, 0.0
    %v109 = vpack.c.bf16 %v108, %v108
    %v110 = vld [vmem:[%s3] sm:$0xf]
    %v111 = vld [vmem:[%s3 + $0x4] sm:$0xf]
    %v112 = vld [vmem:[%s3 + $0x8] sm:$0xf]
    %v113 = vld [vmem:[%s3 + $0xc] sm:$0xf]
    %v114 = vld [vmem:[%s3 + $0x10] sm:$0xf]
    %v115 = vld [vmem:[%s3 + $0x14] sm:$0xf]
    %v116 = vld [vmem:[%s3 + $0x18] sm:$0xf]
    %v117 = vld [vmem:[%s3 + $0x1c] sm:$0xf]
    %v118 = vld [vmem:[%s4] sm:$0x1]
    %v120 = vlaneseq
    %v121 = vshrl.u32 %v120, 7
    %v122 = vsub.s32 0, %v121
    %v123 = vrot.slane %v118, %v122
    %v133 = vunpack.c.l.b16 %v110
    %v134 = vunpack.c.l.b16 %v111
    %v135 = vunpack.c.l.b16 %v112
    %v136 = vunpack.c.l.b16 %v113
    %v137 = vunpack.c.l.b16 %v114
    %v138 = vunpack.c.l.b16 %v115
    %v139 = vunpack.c.l.b16 %v116
    %v140 = vunpack.c.l.b16 %v117
    %v141 = vpack.c.b16 %v134, %v133
    %v142 = vpack.c.b16 %v136, %v135
    %v143 = vpack.c.b16 %v138, %v137
    %v144 = vpack.c.b16 %v140, %v139
    %vm149 = vcmask 523264
    %v151 = vsel %vm149, %v109, 0
    %153 = vmatprep.subr.bf16.mxu0 0
    %154 = vmatpush1.bf16.msra.mxu0 %v141
    %155 = vmatprep.subr.bf16.mxu0 0
    %156 = vmatpush1.bf16.msra.mxu0 %v142
    %157 = vmatprep.subr.bf16.mxu0 0
    %158 = vmatpush1.bf16.msra.mxu0 %v143
    %159 = vmatprep.subr.bf16.mxu0 0
    %160 = vmatpush1.bf16.msra.mxu0 %v144
    %161 = vmatprep.subr.bf16.mxu0 0
    %162 = vmatpush1.bf16.msra.mxu0 0
    %163 = vmatprep.subr.bf16.mxu0 0
    %164 = vmatpush1.bf16.msra.mxu0 0
    %165 = vmatprep.subr.bf16.mxu0 0
    %166 = vmatpush1.bf16.msra.mxu0 0
    %167 = vmatprep.subr.bf16.mxu0 0
    %168 = vmatpush1.bf16.msra.mxu0 0
    %169 = vmatprep.subr.bf16.mxu0 0
    %170 = vmatpush1.bf16.msra.mxu0 0
    %171 = vmatprep.subr.bf16.mxu0 0
    %172 = vmatpush1.bf16.msra.mxu0 0
    %173 = vmatprep.subr.bf16.mxu0 0
    %174 = vmatpush1.bf16.msra.mxu0 0
    %175 = vmatprep.subr.bf16.mxu0 0
    %176 = vmatpush1.bf16.msra.mxu0 0
    %177 = vmatprep.subr.bf16.mxu0 0
    %178 = vmatpush1.bf16.msra.mxu0 0
    %179 = vmatprep.subr.bf16.mxu0 0
    %180 = vmatpush1.bf16.msra.mxu0 0
    %181 = vmatprep.subr.bf16.mxu0 0
    %182 = vmatpush1.bf16.msra.mxu0 0
    %183 = vmatprep.subr.bf16.mxu0 0
    %184 = vmatpush1.bf16.msra.mxu0 0
    %185 = vmatprep.mubr.bf16.mxu0 0
    %186 = vmatmul.mubr.bf16.gmra.mrb[0].mxu0 %v151
    %v187 = vpop.f32.mrb[0].mxu0
    %v188 = vadd.f32 %v123, %v187
    %v189 = vpop.f32.mrb[0].mxu0
    %v190 = vpop.f32.mrb[0].mxu0
    %v191 = vpop.f32.mrb[0].mxu0
    %192 = vdwg.mxu0
    %v193 = vmax.f32 %v188, 0.0
    %v194 = vpack.c.bf16 %v193, %v193
    %v195 = vld [vmem:[%s5] sm:$0x1]
    %v196 = vld [vmem:[#allocation2] sm:$0x1]
    %198 = vset.pattern.permute.xlu0 0
    %199 = vperm.xlu0 %198, %v196
    %v200 = vpop.permute.xlu0 %199
    %v202 = vlaneseq
    %v203 = vshrl.u32 %v202, 7
    %v204 = vsub.s32 0, %v203
    %v205 = vrot.slane %v200, %v204
    %v207 = vsel %vm64, %v195, 0
    %v210 = vsel %vm64, %v194, 0
    %212 = vmatprep.subr.bf16.mxu0 0
    %213 = vmatpush1.bf16.xpose.msra.mxu0 %v210
    %214 = vmatprep.subr.bf16.mxu0 0
    %215 = vmatpush1.bf16.xpose.msra.mxu0 0
    %216 = vmatprep.subr.bf16.mxu0 0
    %217 = vmatpush1.bf16.xpose.msra.mxu0 0
    %218 = vmatprep.subr.bf16.mxu0 0
    %219 = vmatpush1.bf16.xpose.msra.mxu0 0
    %220 = vmatprep.subr.bf16.mxu0 0
    %221 = vmatpush1.bf16.xpose.msra.mxu0 0
    %222 = vmatprep.subr.bf16.mxu0 0
    %223 = vmatpush1.bf16.xpose.msra.mxu0 0
    %224 = vmatprep.subr.bf16.mxu0 0
    %225 = vmatpush1.bf16.xpose.msra.mxu0 0
    %226 = vmatprep.subr.bf16.mxu0 0
    %227 = vmatpush1.bf16.xpose.msra.mxu0 0
    %228 = vmatprep.subr.bf16.mxu0 0
    %229 = vmatpush1.bf16.xpose.msra.mxu0 0
    %230 = vmatprep.subr.bf16.mxu0 0
    %231 = vmatpush1.bf16.xpose.msra.mxu0 0
    %232 = vmatprep.subr.bf16.mxu0 0
    %233 = vmatpush1.bf16.xpose.msra.mxu0 0
    %234 = vmatprep.subr.bf16.mxu0 0
    %235 = vmatpush1.bf16.xpose.msra.mxu0 0
    %236 = vmatprep.subr.bf16.mxu0 0
    %237 = vmatpush1.bf16.xpose.msra.mxu0 0
    %238 = vmatprep.subr.bf16.mxu0 0
    %239 = vmatpush1.bf16.xpose.msra.mxu0 0
    %240 = vmatprep.subr.bf16.mxu0 0
    %241 = vmatpush1.bf16.xpose.msra.mxu0 0
    %242 = vmatprep.subr.bf16.mxu0 0
    %243 = vmatpush1.bf16.xpose.msra.mxu0 0
    %244 = vmatprep.mubr.bf16.mxu0 0
    %245 = vmatmul.mubr.bf16.gmra.mrb[0].mxu0 %v207
    %v246 = vpop.f32.mrb[0].mxu0
    %v247 = vadd.f32 %v205, %v246
    %v248 = vpop.f32.mrb[0].mxu0
    %v249 = vpop.f32.mrb[0].mxu0
    %v250 = vpop.f32.mrb[0].mxu0
    %251 = vdwg.mxu0
    %v252 = vld [vmem:[#allocation3] sm:$0x1]
    %254 = vset.pattern.permute.xlu0 0
    %255 = vperm.xlu0 %254, %v252
    %v256 = vpop.permute.xlu0 %255
    %v258 = vlaneseq
    %v259 = vshrl.u32 %v258, 7
    %v260 = vsub.s32 0, %v259
    %v261 = vrot.slane %v256, %v260
    %v262 = vmul.f32 %v247, %v261
    %v263 = vld [vmem:[#allocation4] sm:$0x1]
    %265 = vset.pattern.permute.xlu0 0
    %266 = vperm.xlu0 %265, %v263
    %v267 = vpop.permute.xlu0 %266
    %v269 = vlaneseq
    %v270 = vshrl.u32 %v269, 7
    %v271 = vsub.s32 0, %v270
    %v272 = vrot.slane %v267, %v271
    %v273 = vadd.f32 %v262, %v272
    %vm274 = vcmask 57344
    %275 = vst.msk [vmem:[#allocation5] sm:$0x1] %vm274, %v273
    // Predicated region
    $region38: #{tpu_custom_call.1} parent=1 // pred_check
      _
    $region39: #{tpu_custom_call.1} parent=1 // pred_check_branch
      %277 = sbr.rel (0) target = $region41
    $region40: #{tpu_custom_call.1} parent=1 // pred_region
      %s279 = ssub.s32 16, 16
      %280 = vsyncadd [#allocation6], %s279
      %s282 = sshll.u32 [#allocation5], 4
      %s283 = int_to_ptr.vmem [resolvable:$true] %s282
      %285 = dma.vmem_to_hbm [thread:$0]  %s283, 16, %s9, [#allocation6]
    $region41: #{tpu_custom_call.1} parent=1 // pred_fallthru
      _
    // Predicated region
    $region42: #{tpu_custom_call.1} parent=1 // pred_check
      _
    $region43: #{tpu_custom_call.1} parent=1 // pred_check_branch
      %287 = sbr.rel (0) target = $region45
    $region44: #{tpu_custom_call.1} parent=1 // pred_region
      %288 = dma.done [#allocation6], 16
    $region45: #{tpu_custom_call.1} parent=1 // pred_fallthru
      _
    %289 = vsyncpa [#allocation6], 1

</llo_original>
